<compile_context>
chip_gen: v7x
topology: tpu7x:2x2x1
jax: 0.10.0
libtpu: 0.0.40
codegen_flags: <defaults>
</compile_context>

<pallas_src>
import functools
from functools import partial

import jax
import jax.numpy as jnp
import numpy as np
from jax.experimental import pallas as pl
from jax.experimental.pallas import tpu as pltpu


# --------------------------------------------------------------------------- #
# Kernel                                                                      #
# --------------------------------------------------------------------------- #
def _make_kernel(T, F, Cpad, ws_max, t_out_pad, T_scr):
    PAD_L = 1  # Conv2d padding=(1, 0): one zero row on the left of time.

    def kernel(x_ref, wc_ref, bc_ref, wschan_ref, wl_ref, bl_ref, out_ref, xp_scr):
        bt = x_ref.shape[0]

        # --- bf16 time-padded staging scratch -------------------------------
        # Pad rows are re-zeroed every step (a handful of rows, VPU stores) so
        # the kernel is correct even when megacore gives a core program_ids
        # that never include 0; the interior is overwritten with this step's
        # batch tile (single fused f32->bf16 cast + copy pass).
        xp_scr[:, :PAD_L, :] = jnp.zeros((bt, PAD_L, F), jnp.bfloat16)
        xp_scr[:, PAD_L + T:, :] = jnp.zeros((bt, T_scr - PAD_L - T, F),
                                             jnp.bfloat16)
        xp_scr[:, PAD_L:PAD_L + T, :] = x_ref[...].astype(jnp.bfloat16)

        # --- all conv branches, one MXU push per time shift ------------------
        # wc[w] holds row w of every branch's filter (zero-padded to ws_max and
        # stacked along a lane-dense Cpad output-channel axis).  This avoids the
        # ws_max*F im2col slab entirely; batch stays folded into the M dim.
        acc = jnp.zeros((bt * t_out_pad, Cpad), jnp.float32)
        for w in range(ws_max):
            chunk = xp_scr[:, w:w + t_out_pad, :].reshape(bt * t_out_pad, F)
            acc = acc + jnp.dot(chunk, wc_ref[w],
                                preferred_element_type=jnp.float32)
        acc = acc.reshape(bt, t_out_pad, Cpad)

        # --- fused VPU epilogue ----------------------------------------------
        # bias + leaky_relu(0.2) + per-branch time-validity mask (also covers
        # the rows added by padding t_out to a sublane multiple) + max-pool.
        acc = acc + bc_ref[...].reshape(1, 1, Cpad)
        acc = jnp.where(acc >= 0, acc, 0.2 * acc)
        # valid length per channel = T + 3 - window_size, clamped to >= 1 so the
        # -1e30 sentinel can never win the max and leak into the score.
        vl = jnp.maximum(jnp.int32(T + 3) - wschan_ref[...], 1)
        t_idx = jax.lax.broadcasted_iota(jnp.int32, (1, t_out_pad, 1), 1)
        acc = jnp.where(t_idx < vl.reshape(1, 1, Cpad), acc, jnp.float32(-1e30))
        pooled = jnp.max(acc, axis=1)                          # (bt, Cpad)

        # TODO(synk): feature_dropout is identity at inference time; not modeled.
        # Final Linear(n*C -> 1) as a VPU multiply + lane reduce (padded wl = 0),
        # stored lane-dense as one (1, bt) row (the (bt,1)->(1,bt) move is ~2
        # vregs of XLU work, vs. masked 1-lane stores otherwise).
        scores = jnp.sum(pooled * wl_ref[...], axis=1, keepdims=True)   # (bt, 1)
        out_ref[...] = scores.reshape(1, bt) + bl_ref[...]

    return kernel


# --------------------------------------------------------------------------- #
# Generation-aware tiling                                                     #
# --------------------------------------------------------------------------- #
@functools.lru_cache(maxsize=1)
def _vmem_budget_bytes():
    """VMEM budget: ~3/4 of physical (96 MiB on v5e/v6e, 48 MiB on v7x/TC)."""
    phys = 64 * 1024 * 1024  # conservative default = v7x per-TensorCore VMEM
    try:
        info = pltpu.get_tpu_info()
        for attr in ("vmem_capacity_bytes", "vmem_bytes", "vmem_size_bytes"):
            v = getattr(info, attr, None)
            if v:
                phys = int(v)
                break
    except Exception:
        pass
    return min(int(phys * 3 // 4), 112 * 1024 * 1024)


def _choose_b_tile(B, T, F, Cpad, ws_max, t_out_pad, T_scr, vmem_budget):
    # Per-batch-row VMEM bytes (with headroom for compiler temporaries).
    per_row = (
        2 * T * F * 4               # f32 x tile, double-buffered by the pipeline
        + T_scr * F * 2             # bf16 time-padded scratch
        + t_out_pad * Cpad * 4      # f32 conv accumulator slab
        + 2 * t_out_pad * F * 2     # live bf16 per-shift chunks
    )
    per_row = int(per_row * 1.25) + 64
    fixed = (
        2 * ws_max * F * Cpad * 2   # conv weights (broadcast, double-buffered)
        + 8 * Cpad * 4 * 2          # bias / window-size / linear rows
        + 256 * 1024                # outputs, control, misc slack
    )
    tile = max(8, ((vmem_budget - fixed) // per_row) // 8 * 8)
    if B >= 16:
        # Keep >= 2 grid steps so dimension_semantics=("parallel",) can spread
        # the batch across both v7x TensorCores (no effect on v5e/v6e).
        half = ((B + 1) // 2 + 7) // 8 * 8
        tile = min(tile, half)
    tile = min(tile, max(B, 1), 1024)
    return int(tile)


# --------------------------------------------------------------------------- #
# One-time parameter packing (hoisted out of the forward path)                #
# --------------------------------------------------------------------------- #
def pack_cnn_discriminator_params(conv_weights, conv_biases, lin_w, lin_b,
                                  window_sizes):
    """Pack per-branch Conv2d params into one lane-dense weight stack.

    conv weight i has layout (ws_i, F, C) (PyTorch Conv2d weight (C,1,ws_i,F)
    transposed).  Call once per parameter set; the forward only consumes the
    packed arrays.  spectral_norm (if used) is assumed already folded into the
    weights (inference-time view).
    """
    F = int(conv_weights[0].shape[1])
    C = int(conv_weights[0].shape[2])
    n = len(window_sizes)
    ws_max = max(window_sizes)
    ws_min = min(window_sizes)
    Cpad = ((n * C + 127) // 128) * 128   # lane-dense output-channel axis

    wc = np.zeros((ws_max, F, Cpad), np.float32)
    bc = np.zeros((1, Cpad), np.float32)
    wschan = np.full((1, Cpad), ws_min, np.int32)   # padded channels: any valid ws
    wl = np.zeros((1, Cpad), np.float32)
    for i, (w, b, ws) in enumerate(zip(conv_weights, conv_biases, window_sizes)):
        wc[:ws, :, i * C:(i + 1) * C] = np.asarray(w, np.float32)
        bc[0, i * C:(i + 1) * C] = np.asarray(b, np.float32)
        wschan[0, i * C:(i + 1) * C] = ws
    wl[0, :n * C] = np.asarray(lin_w, np.float32)[:, 0]
    bl = np.asarray(lin_b, np.float32).reshape(1, 1)

    return dict(
        wc=jnp.asarray(wc, jnp.bfloat16),
        bc=jnp.asarray(bc),
        wschan=jnp.asarray(wschan),
        wl=jnp.asarray(wl),
        bl=jnp.asarray(bl),
    )


# --------------------------------------------------------------------------- #
# Forward                                                                     #
# --------------------------------------------------------------------------- #
@partial(jax.jit, static_argnames=("window_sizes",))
def cnn_discriminator_forward(x, wc, bc, wschan, wl, bl, *, window_sizes):
    """x: (B, T, F) float.  Returns scores of shape (B,) (== module forward).

    # TODO(synk): optional input_mask / use_logits / early_stem forward branches
    # are not modeled; this implements the default score-producing path.
    """
    B, T, F = x.shape
    Cpad = wc.shape[-1]
    ws_max = max(window_sizes)
    ws_min = min(window_sizes)
    assert ws_min <= T + 2, "smallest window larger than the padded sequence"

    t_out = T + 3 - ws_min                      # time positions computed per branch
    t_out_pad = ((t_out + 15) // 16) * 16       # bf16 sublane multiple -> free merges
    T_scr = t_out_pad + ws_max - 1              # padded-time scratch extent

    vmem_budget = _vmem_budget_bytes()
    B_tile = _choose_b_tile(B, T, F, Cpad, ws_max, t_out_pad, T_scr, vmem_budget)
    num_tiles = pl.cdiv(B, B_tile)

    kernel = _make_kernel(T, F, Cpad, ws_max, t_out_pad, T_scr)

    # Broadcast operands (constant index_map) are left default-double-buffered on
    # purpose (accounted for in the VMEM budget) rather than relying on
    # BlockSpec pipeline_mode support; they are tiny next to the per-row buffers.
    out = pl.pallas_call(
        kernel,
        out_shape=jax.ShapeDtypeStruct((num_tiles, B_tile), jnp.float32),
        grid=(num_tiles,),
        in_specs=[
            pl.BlockSpec((B_tile, T, F), lambda b: (b, 0, 0)),       # x (f32, as-is)
            pl.BlockSpec((ws_max, F, Cpad), lambda b: (0, 0, 0)),    # stacked conv W
            pl.BlockSpec((1, Cpad), lambda b: (0, 0)),               # stacked bias
            pl.BlockSpec((1, Cpad), lambda b: (0, 0)),               # per-channel ws
            pl.BlockSpec((1, Cpad), lambda b: (0, 0)),               # linear weight row
            pl.BlockSpec((1, 1), lambda b: (0, 0)),                  # linear bias
        ],
        out_specs=pl.BlockSpec((1, B_tile), lambda b: (b, 0)),       # lane-dense row
        scratch_shapes=[pltpu.VMEM((B_tile, T_scr, F), jnp.bfloat16)],
        compiler_params=pltpu.CompilerParams(
            dimension_semantics=("parallel",),
            vmem_limit_bytes=vmem_budget),
    )(x, wc, bc, wschan, wl, bl)

    return out.reshape(-1)[:B]


# --------------------------------------------------------------------------- #
# Pure-JAX reference                                                          #
# --------------------------------------------------------------------------- #
def _reference(x, conv_weights, conv_biases, lin_w, lin_b, window_sizes):
    """Pure-JAX reference (bf16-rounded MXU inputs to match the kernel)."""
    B, T, F = x.shape
    x = x.astype(jnp.bfloat16).astype(jnp.float32)
    xp = jnp.pad(x, ((0, 0), (1, 1), (0, 0)))
    feats = []
    for w, b, ws in zip(conv_weights, conv_biases, window_sizes):
        w = w.astype(jnp.bfloat16).astype(jnp.float32)
        t_out = T + 3 - ws
        windows = jnp.stack([xp[:, i:i + t_out, :] for i in range(ws)], axis=2)
        out = jnp.einsum('btwf,wfc->btc', windows, w,
                         precision=jax.lax.Precision.HIGHEST) + b[None, None, :]
        out = jnp.where(out >= 0, out, 0.2 * out)
        feats.append(out.max(axis=1))
    feat = jnp.concatenate(feats, axis=1)
    return jnp.sum(feat * lin_w[:, 0][None, :], axis=1) + lin_b[0]


# --------------------------------------------------------------------------- #
# Demo / self-test                                                            #
# --------------------------------------------------------------------------- #
if __name__ == "__main__":
    B, T = 2, 8
    feature_size = 32
    filter_size = 8
    window_sizes = (3, 4, 5)

    key = jax.random.PRNGKey(0)
    keys = jax.random.split(key, 2 * len(window_sizes) + 3)

    x = jax.random.normal(keys[0], (B, T, feature_size), jnp.float32)

    # Synthetic parameters (Conv2d weight (C,1,ws,F) stored as (ws,F,C)).
    conv_weights, conv_biases = [], []
    for i, ws in enumerate(window_sizes):
        conv_weights.append(0.1 * jax.random.normal(
            keys[1 + 2 * i], (ws, feature_size, filter_size), jnp.float32))
        conv_biases.append(0.1 * jax.random.normal(
            keys[2 + 2 * i], (filter_size,), jnp.float32))
    lin_w = 0.1 * jax.random.normal(
        keys[-2], (filter_size * len(window_sizes), 1), jnp.float32)
    lin_b = 0.1 * jax.random.normal(keys[-1], (1,), jnp.float32)

    packed = pack_cnn_discriminator_params(
        conv_weights, conv_biases, lin_w, lin_b, window_sizes)

    scores = cnn_discriminator_forward(
        x, packed["wc"], packed["bc"], packed["wschan"], packed["wl"],
        packed["bl"], window_sizes=window_sizes)
    scores = jax.block_until_ready(scores)

    ref = _reference(x, conv_weights, conv_biases, lin_w, lin_b, window_sizes)
    np.testing.assert_allclose(np.asarray(scores), np.asarray(ref),
                               rtol=1e-4, atol=1e-4)

    print("KERNEL_OK")
</pallas_src>

<mosaic_0001>
module attributes {stable_mosaic.version = 11 : i64} {
  func.func @kernel(%arg0: i32, %arg1: memref<2x8x32xf32, #tpu.memory_space<vmem>>, %arg2: memref<5x32x128xbf16, #tpu.memory_space<vmem>>, %arg3: memref<1x128xf32, #tpu.memory_space<vmem>>, %arg4: memref<1x128xi32, #tpu.memory_space<vmem>>, %arg5: memref<1x128xf32, #tpu.memory_space<vmem>>, %arg6: memref<1x1xf32, #tpu.memory_space<vmem>>, %arg7: memref<1x2xf32, #tpu.memory_space<vmem>>, %arg8: memref<2x20x32xbf16, #tpu.memory_space<vmem>>) attributes {dimension_semantics = [#tpu.dimension_semantics<parallel>], iteration_bounds = array<i64: 1>, scalar_prefetch = 0 : i64, scratch_operands = 1 : i64, tpu.core_type = #tpu.core_type<tc>, window_params = [{transform_indices = @transform_0, window_bounds = array<i64: 2, 8, 32>}, {pipeline_mode = #tpu.pipeline_mode<synchronous>, transform_indices = @transform_1, window_bounds = array<i64: 5, 32, 128>}, {pipeline_mode = #tpu.pipeline_mode<synchronous>, transform_indices = @transform_2, window_bounds = array<i64: 1, 128>}, {pipeline_mode = #tpu.pipeline_mode<synchronous>, transform_indices = @transform_3, window_bounds = array<i64: 1, 128>}, {pipeline_mode = #tpu.pipeline_mode<synchronous>, transform_indices = @transform_4, window_bounds = array<i64: 1, 128>}, {pipeline_mode = #tpu.pipeline_mode<synchronous>, transform_indices = @transform_5, window_bounds = array<i64: 1, 1>}, {transform_indices = @transform_6, window_bounds = array<i64: 1, 2>}]} {
    %cst = arith.constant 0.000000e+00 : bf16
    %0 = vector.broadcast %cst : bf16 to vector<2x1x32xbf16>
    %c0 = arith.constant 0 : index
    %c0_0 = arith.constant 0 : index
    %c0_1 = arith.constant 0 : index
    %1 = vector.load %arg8[%c0, %c0_0, %c0_1] : memref<2x20x32xbf16, #tpu.memory_space<vmem>>, vector<2x1x32xbf16>
    tpu.vector_store %arg8[%c0, %c0_0, %c0_1], %0 {strides = array<i32>} : memref<2x20x32xbf16, #tpu.memory_space<vmem>>, vector<2x1x32xbf16>,
    %cst_2 = arith.constant 0.000000e+00 : bf16
    %2 = vector.broadcast %cst_2 : bf16 to vector<2x11x32xbf16>
    %c0_3 = arith.constant 0 : index
    %c9 = arith.constant 9 : index
    %c0_4 = arith.constant 0 : index
    %3 = vector.load %arg8[%c0_3, %c9, %c0_4] : memref<2x20x32xbf16, #tpu.memory_space<vmem>>, vector<2x11x32xbf16>
    tpu.vector_store %arg8[%c0_3, %c9, %c0_4], %2 {strides = array<i32>} : memref<2x20x32xbf16, #tpu.memory_space<vmem>>, vector<2x11x32xbf16>,
    %c0_5 = arith.constant 0 : index
    %c0_6 = arith.constant 0 : index
    %c0_7 = arith.constant 0 : index
    %4 = vector.load %arg1[%c0_5, %c0_6, %c0_7] : memref<2x8x32xf32, #tpu.memory_space<vmem>>, vector<2x8x32xf32>
    %5 = arith.truncf %4 : vector<2x8x32xf32> to vector<2x8x32xbf16>
    %c0_8 = arith.constant 0 : index
    %c1 = arith.constant 1 : index
    %c0_9 = arith.constant 0 : index
    %6 = vector.load %arg8[%c0_8, %c1, %c0_9] : memref<2x20x32xbf16, #tpu.memory_space<vmem>>, vector<2x8x32xbf16>
    tpu.vector_store %arg8[%c0_8, %c1, %c0_9], %5 {strides = array<i32>} : memref<2x20x32xbf16, #tpu.memory_space<vmem>>, vector<2x8x32xbf16>,
    %cst_10 = arith.constant 0.000000e+00 : f32
    %7 = vector.broadcast %cst_10 : f32 to vector<32x128xf32>
    %c0_11 = arith.constant 0 : index
    %c0_12 = arith.constant 0 : index
    %c0_13 = arith.constant 0 : index
    %8 = vector.load %arg8[%c0_11, %c0_12, %c0_13] : memref<2x20x32xbf16, #tpu.memory_space<vmem>>, vector<2x16x32xbf16>
    %9 = vector.shape_cast %8 : vector<2x16x32xbf16> to vector<32x32xbf16>
    %c0_14 = arith.constant 0 : index
    %c0_15 = arith.constant 0 : index
    %c0_16 = arith.constant 0 : index
    %10 = vector.load %arg2[%c0_14, %c0_15, %c0_16] : memref<5x32x128xbf16, #tpu.memory_space<vmem>>, vector<1x32x128xbf16>
    %11 = vector.shape_cast %10 : vector<1x32x128xbf16> to vector<32x128xbf16>
    %cst_17 = arith.constant dense<0.000000e+00> : vector<32x128xf32>
    %12 = tpu.matmul %9, %11, %cst_17 {dimension_numbers = #tpu.dot_dimension_numbers<[1], [0], [0], [1], [0, 0, 1, 1], [], []>} : vector<32x32xbf16>, vector<32x128xbf16>, vector<32x128xf32> -> vector<32x128xf32>
    %13 = arith.addf %7, %12 : vector<32x128xf32>
    %c0_18 = arith.constant 0 : index
    %c1_19 = arith.constant 1 : index
    %c0_20 = arith.constant 0 : index
    %14 = vector.load %arg8[%c0_18, %c1_19, %c0_20] : memref<2x20x32xbf16, #tpu.memory_space<vmem>>, vector<2x16x32xbf16>
    %15 = vector.shape_cast %14 : vector<2x16x32xbf16> to vector<32x32xbf16>
    %c1_21 = arith.constant 1 : index
    %c0_22 = arith.constant 0 : index
    %c0_23 = arith.constant 0 : index
    %16 = vector.load %arg2[%c1_21, %c0_22, %c0_23] : memref<5x32x128xbf16, #tpu.memory_space<vmem>>, vector<1x32x128xbf16>
    %17 = vector.shape_cast %16 : vector<1x32x128xbf16> to vector<32x128xbf16>
    %cst_24 = arith.constant dense<0.000000e+00> : vector<32x128xf32>
    %18 = tpu.matmul %15, %17, %cst_24 {dimension_numbers = #tpu.dot_dimension_numbers<[1], [0], [0], [1], [0, 0, 1, 1], [], []>} : vector<32x32xbf16>, vector<32x128xbf16>, vector<32x128xf32> -> vector<32x128xf32>
    %19 = arith.addf %13, %18 : vector<32x128xf32>
    %c0_25 = arith.constant 0 : index
    %c2 = arith.constant 2 : index
    %c0_26 = arith.constant 0 : index
    %20 = vector.load %arg8[%c0_25, %c2, %c0_26] : memref<2x20x32xbf16, #tpu.memory_space<vmem>>, vector<2x16x32xbf16>
    %21 = vector.shape_cast %20 : vector<2x16x32xbf16> to vector<32x32xbf16>
    %c2_27 = arith.constant 2 : index
    %c0_28 = arith.constant 0 : index
    %c0_29 = arith.constant 0 : index
    %22 = vector.load %arg2[%c2_27, %c0_28, %c0_29] : memref<5x32x128xbf16, #tpu.memory_space<vmem>>, vector<1x32x128xbf16>
    %23 = vector.shape_cast %22 : vector<1x32x128xbf16> to vector<32x128xbf16>
    %cst_30 = arith.constant dense<0.000000e+00> : vector<32x128xf32>
    %24 = tpu.matmul %21, %23, %cst_30 {dimension_numbers = #tpu.dot_dimension_numbers<[1], [0], [0], [1], [0, 0, 1, 1], [], []>} : vector<32x32xbf16>, vector<32x128xbf16>, vector<32x128xf32> -> vector<32x128xf32>
    %25 = arith.addf %19, %24 : vector<32x128xf32>
    %c0_31 = arith.constant 0 : index
    %c3 = arith.constant 3 : index
    %c0_32 = arith.constant 0 : index
    %26 = vector.load %arg8[%c0_31, %c3, %c0_32] : memref<2x20x32xbf16, #tpu.memory_space<vmem>>, vector<2x16x32xbf16>
    %27 = vector.shape_cast %26 : vector<2x16x32xbf16> to vector<32x32xbf16>
    %c3_33 = arith.constant 3 : index
    %c0_34 = arith.constant 0 : index
    %c0_35 = arith.constant 0 : index
    %28 = vector.load %arg2[%c3_33, %c0_34, %c0_35] : memref<5x32x128xbf16, #tpu.memory_space<vmem>>, vector<1x32x128xbf16>
    %29 = vector.shape_cast %28 : vector<1x32x128xbf16> to vector<32x128xbf16>
    %cst_36 = arith.constant dense<0.000000e+00> : vector<32x128xf32>
    %30 = tpu.matmul %27, %29, %cst_36 {dimension_numbers = #tpu.dot_dimension_numbers<[1], [0], [0], [1], [0, 0, 1, 1], [], []>} : vector<32x32xbf16>, vector<32x128xbf16>, vector<32x128xf32> -> vector<32x128xf32>
    %31 = arith.addf %25, %30 : vector<32x128xf32>
    %c0_37 = arith.constant 0 : index
    %c4 = arith.constant 4 : index
    %c0_38 = arith.constant 0 : index
    %32 = vector.load %arg8[%c0_37, %c4, %c0_38] : memref<2x20x32xbf16, #tpu.memory_space<vmem>>, vector<2x16x32xbf16>
    %33 = vector.shape_cast %32 : vector<2x16x32xbf16> to vector<32x32xbf16>
    %c4_39 = arith.constant 4 : index
    %c0_40 = arith.constant 0 : index
    %c0_41 = arith.constant 0 : index
    %34 = vector.load %arg2[%c4_39, %c0_40, %c0_41] : memref<5x32x128xbf16, #tpu.memory_space<vmem>>, vector<1x32x128xbf16>
    %35 = vector.shape_cast %34 : vector<1x32x128xbf16> to vector<32x128xbf16>
    %cst_42 = arith.constant dense<0.000000e+00> : vector<32x128xf32>
    %36 = tpu.matmul %33, %35, %cst_42 {dimension_numbers = #tpu.dot_dimension_numbers<[1], [0], [0], [1], [0, 0, 1, 1], [], []>} : vector<32x32xbf16>, vector<32x128xbf16>, vector<32x128xf32> -> vector<32x128xf32>
    %37 = arith.addf %31, %36 : vector<32x128xf32>
    %38 = vector.shape_cast %37 : vector<32x128xf32> to vector<2x16x128xf32>
    %c0_43 = arith.constant 0 : index
    %c0_44 = arith.constant 0 : index
    %39 = vector.load %arg3[%c0_43, %c0_44] : memref<1x128xf32, #tpu.memory_space<vmem>>, vector<1x128xf32>
    %40 = vector.shape_cast %39 : vector<1x128xf32> to vector<1x1x128xf32>
    %41 = vector.broadcast %40 : vector<1x1x128xf32> to vector<2x16x128xf32>
    %42 = arith.addf %38, %41 : vector<2x16x128xf32>
    %cst_45 = arith.constant 0.000000e+00 : f32
    %43 = vector.broadcast %cst_45 : f32 to vector<2x16x128xf32>
    %44 = arith.cmpf oge, %42, %43 : vector<2x16x128xf32>
    %cst_46 = arith.constant 2.000000e-01 : f32
    %45 = vector.broadcast %cst_46 : f32 to vector<2x16x128xf32>
    %46 = arith.mulf %45, %42 : vector<2x16x128xf32>
    %47 = arith.select %44, %42, %46 : vector<2x16x128xi1>, vector<2x16x128xf32>
    %c0_47 = arith.constant 0 : index
    %c0_48 = arith.constant 0 : index
    %48 = vector.load %arg4[%c0_47, %c0_48] : memref<1x128xi32, #tpu.memory_space<vmem>>, vector<1x128xi32>
    %c11_i32 = arith.constant 11 : i32
    %49 = vector.broadcast %c11_i32 : i32 to vector<1x128xi32>
    %50 = arith.subi %49, %48 : vector<1x128xi32>
    %c1_i32 = arith.constant 1 : i32
    %51 = vector.broadcast %c1_i32 : i32 to vector<1x128xi32>
    %52 = arith.maxsi %50, %51 : vector<1x128xi32>
    %53 = tpu.iota {dimensions = array<i32: 1>} : vector<1x16x1xi32>
    %54 = vector.shape_cast %52 : vector<1x128xi32> to vector<1x1x128xi32>
    %55 = vector.broadcast %53 : vector<1x16x1xi32> to vector<1x16x128xi32>
    %56 = vector.broadcast %54 : vector<1x1x128xi32> to vector<1x16x128xi32>
    %57 = arith.cmpi slt, %55, %56 : vector<1x16x128xi32>
    %cst_49 = arith.constant -1.000000e+30 : f32
    %58 = vector.shape_cast %57 : vector<1x16x128xi1> to vector<1x16x128xi1>
    %59 = vector.broadcast %58 : vector<1x16x128xi1> to vector<2x16x128xi1>
    %60 = vector.broadcast %cst_49 : f32 to vector<2x16x128xf32>
    %61 = arith.select %59, %47, %60 : vector<2x16x128xi1>, vector<2x16x128xf32>
    %cst_50 = arith.constant dense<0xFF800000> : vector<2x128xf32>
    %62 = vector.multi_reduction <maximumf>, %61, %cst_50 [1] : vector<2x16x128xf32> to vector<2x128xf32>
    %c0_51 = arith.constant 0 : index
    %c0_52 = arith.constant 0 : index
    %63 = vector.load %arg5[%c0_51, %c0_52] : memref<1x128xf32, #tpu.memory_space<vmem>>, vector<1x128xf32>
    %64 = vector.broadcast %63 : vector<1x128xf32> to vector<2x128xf32>
    %65 = arith.mulf %62, %64 : vector<2x128xf32>
    %cst_53 = arith.constant dense<0.000000e+00> : vector<2xf32>
    %66 = vector.multi_reduction <add>, %65, %cst_53 [1] : vector<2x128xf32> to vector<2xf32>
    %67 = vector.shape_cast %66 : vector<2xf32> to vector<2x1xf32>
    %68 = vector.shape_cast %67 : vector<2x1xf32> to vector<1x2xf32>
    %c0_54 = arith.constant 0 : index
    %c0_55 = arith.constant 0 : index
    %69 = vector.load %arg6[%c0_54, %c0_55] : memref<1x1xf32, #tpu.memory_space<vmem>>, vector<1x1xf32>
    %70 = vector.broadcast %69 : vector<1x1xf32> to vector<1x2xf32>
    %71 = arith.addf %68, %70 : vector<1x2xf32>
    %c0_56 = arith.constant 0 : index
    %c0_57 = arith.constant 0 : index
    %72 = vector.load %arg7[%c0_56, %c0_57] : memref<1x2xf32, #tpu.memory_space<vmem>>, vector<1x2xf32>
    tpu.vector_store %arg7[%c0_56, %c0_57], %71 {strides = array<i32>} : memref<1x2xf32, #tpu.memory_space<vmem>>, vector<1x2xf32>,
    return
  }
  func.func @transform_0(%arg0: i32) -> (i32, i32, i32) {
    %c0_i32 = arith.constant 0 : i32
    %c0_i32_0 = arith.constant 0 : i32
    %c0_i32_1 = arith.constant 0 : i32
    return %arg0, %c0_i32, %c0_i32_0 : i32, i32, i32
  }
  func.func @transform_1(%arg0: i32) -> (i32, i32, i32) {
    %c0_i32 = arith.constant 0 : i32
    %c0_i32_0 = arith.constant 0 : i32
    %c0_i32_1 = arith.constant 0 : i32
    %c0_i32_2 = arith.constant 0 : i32
    return %c0_i32, %c0_i32_0, %c0_i32_1 : i32, i32, i32
  }
  func.func @transform_2(%arg0: i32) -> (i32, i32) {
    %c0_i32 = arith.constant 0 : i32
    %c0_i32_0 = arith.constant 0 : i32
    %c0_i32_1 = arith.constant 0 : i32
    return %c0_i32, %c0_i32_0 : i32, i32
  }
  func.func @transform_3(%arg0: i32) -> (i32, i32) {
    %c0_i32 = arith.constant 0 : i32
    %c0_i32_0 = arith.constant 0 : i32
    %c0_i32_1 = arith.constant 0 : i32
    return %c0_i32, %c0_i32_0 : i32, i32
  }
  func.func @transform_4(%arg0: i32) -> (i32, i32) {
    %c0_i32 = arith.constant 0 : i32
    %c0_i32_0 = arith.constant 0 : i32
    %c0_i32_1 = arith.constant 0 : i32
    return %c0_i32, %c0_i32_0 : i32, i32
  }
  func.func @transform_5(%arg0: i32) -> (i32, i32) {
    %c0_i32 = arith.constant 0 : i32
    %c0_i32_0 = arith.constant 0 : i32
    %c0_i32_1 = arith.constant 0 : i32
    return %c0_i32, %c0_i32_0 : i32, i32
  }
  func.func @transform_6(%arg0: i32) -> (i32, i32) {
    %c0_i32 = arith.constant 0 : i32
    %c0_i32_0 = arith.constant 0 : i32
    return %arg0, %c0_i32 : i32, i32
  }
}

</mosaic_0001>

<llo_original>
// kernel: cnn_discriminator_forward.1
$region0: #{cnn_discriminator_forward.1}
  #allocation0 [shape = 'u32[]', space=smem, size = 0x4, offset = 0x4, fixed_abs, tag = 'smem constant byte address 0x4 - core index']
  #allocation1 [shape = 'u32[144,128]{1,0:T(1,128)}', space=vmem, size = 0x12000, scoped, tag = 'internal scratch']
  #allocation2 [shape = 'bf16[2,20,32]{2,1,0:T(8,128)(2,1)}', space=vmem, size = 0x3000, scoped, tag = 'scratch operand']
  #allocation3 [shape = 'f32[1,1]{1,0:T(1,128)S(1)}', space=vmem, size = 0x200, scoped, tag = 'scoped memory for cnn_discriminator_forward.1']
  %s0 = inlined_call_operand.hbm [shape: f32[2,8,32], index: 0, kind: input, shape index: {}]
  %s1 = inlined_call_operand.hbm [shape: bf16[5,32,128], index: 1, kind: input, shape index: {}]
  %s2 = inlined_call_operand.vmem [shape: f32[1,128], index: 2, kind: input, shape index: {}]
  %s3 = inlined_call_operand.vmem [shape: s32[1,128], index: 3, kind: input, shape index: {}]
  %s4 = inlined_call_operand.vmem [shape: f32[1,128], index: 4, kind: input, shape index: {}]
  %s5 = inlined_call_operand.<no memory space> [shape: f32[1,1], index: 5, kind: input, shape index: {}]
  %s6 = inlined_call_operand.hbm [shape: f32[1,2], index: 6, kind: output, shape index: {}]
  %s7 = sld [smem:[#allocation0]]
  $region42: #{cnn_discriminator_forward.1} parent=0
    _
  %s9 = ssub.s32 1, %s7
  %s10 = scalar_select 0, %s9, %s7
  %v11 = vstv %s5
  %12 = vst [vmem:[#allocation3] sm:$0x1] %v11
  $region1: #{cnn_discriminator_forward.1} parent=0
    #allocation4 [shape = 'u8[8192]{0}', space=vmem, size = 0x2000, scoped, tag = 'input window, operand 0, single buffered']
    #allocation5 [shape = 's32[1]{0}', space=sflag, size = 0x4, scoped, tag = 'scoped memory for cnn_discriminator_forward.1']
    #allocation6 [shape = 's32[1]{0}', space=sflag, size = 0x4, scoped, tag = 'scoped memory for cnn_discriminator_forward.1']
    #allocation7 [shape = 'u8[40960]{0}', space=vmem, size = 0xa000, scoped, tag = 'input window, operand 1, single buffered']
    #allocation8 [shape = 's32[1]{0}', space=sflag, size = 0x4, scoped, tag = 'scoped memory for cnn_discriminator_forward.1']
    #allocation9 [shape = 'u8[512]{0}', space=vmem, size = 0x400, scoped, tag = 'output window, operand 0, single buffered']
    %13 = vsyncpa [#allocation5], 0
    %14 = vsyncpa [#allocation8], 0
    %15 = vsyncpa [#allocation6], 0
    // Predicated region
    $region2: #{cnn_discriminator_forward.1} parent=1 // pred_check
      _
    $region3: #{cnn_discriminator_forward.1} parent=1 // pred_check_branch
      %17 = sbr.rel (0) target = $region5
    $region4: #{cnn_discriminator_forward.1} parent=1 // pred_region
      %s19 = ssub.s32 256, 256
      %20 = vsyncadd [#allocation5], %s19
      %s21 = sshll.u32 [#allocation4], 4
      %s22 = int_to_ptr.vmem [resolvable:$true] %s21
      %27 = dma.hbm_to_vmem [thread:$0]  %s0, 256, %s22, [#allocation5], 128, 128, 8
    $region5: #{cnn_discriminator_forward.1} parent=1 // pred_fallthru
      _
    // Predicated region
    $region6: #{cnn_discriminator_forward.1} parent=1 // pred_check
      _
    $region7: #{cnn_discriminator_forward.1} parent=1 // pred_check_branch
      %29 = sbr.rel (0) target = $region9
    $region8: #{cnn_discriminator_forward.1} parent=1 // pred_region
      %s31 = ssub.s32 1280, 1280
      %32 = vsyncadd [#allocation8], %s31
      %s33 = sshll.u32 [#allocation7], 4
      %s34 = int_to_ptr.vmem [resolvable:$true] %s33
      %39 = dma.hbm_to_vmem [thread:$0]  %s1, 1280, %s34, [#allocation8], 64, 64, 4
    $region9: #{cnn_discriminator_forward.1} parent=1 // pred_fallthru
      _
    // Predicated region
    $region10: #{cnn_discriminator_forward.1} parent=1 // pred_check
      _
    $region11: #{cnn_discriminator_forward.1} parent=1 // pred_check_branch
      %41 = sbr.rel (0) target = $region13
    $region12: #{cnn_discriminator_forward.1} parent=1 // pred_region
      _
    $region13: #{cnn_discriminator_forward.1} parent=1 // pred_fallthru
      _
    // Predicated region
    $region14: #{cnn_discriminator_forward.1} parent=1 // pred_check
      _
    $region15: #{cnn_discriminator_forward.1} parent=1 // pred_check_branch
      %43 = sbr.rel (0) target = $region17
    $region16: #{cnn_discriminator_forward.1} parent=1 // pred_region
      _
    $region17: #{cnn_discriminator_forward.1} parent=1 // pred_fallthru
      _
    // Predicated region
    $region18: #{cnn_discriminator_forward.1} parent=1 // pred_check
      _
    $region19: #{cnn_discriminator_forward.1} parent=1 // pred_check_branch
      %45 = sbr.rel (0) target = $region21
    $region20: #{cnn_discriminator_forward.1} parent=1 // pred_region
      _
    $region21: #{cnn_discriminator_forward.1} parent=1 // pred_fallthru
      _
    // Predicated region
    $region22: #{cnn_discriminator_forward.1} parent=1 // pred_check
      _
    $region23: #{cnn_discriminator_forward.1} parent=1 // pred_check_branch
      %47 = sbr.rel (0) target = $region25
    $region24: #{cnn_discriminator_forward.1} parent=1 // pred_region
      _
    $region25: #{cnn_discriminator_forward.1} parent=1 // pred_fallthru
      _
    // Predicated region
    $region26: #{cnn_discriminator_forward.1} parent=1 // pred_check
      _
    $region27: #{cnn_discriminator_forward.1} parent=1 // pred_check_branch
      %49 = sbr.rel (0) target = $region29
    $region28: #{cnn_discriminator_forward.1} parent=1 // pred_region
      %50 = dma.done [#allocation5], 256
    $region29: #{cnn_discriminator_forward.1} parent=1 // pred_fallthru
      _
    // Predicated region
    $region30: #{cnn_discriminator_forward.1} parent=1 // pred_check
      _
    $region31: #{cnn_discriminator_forward.1} parent=1 // pred_check_branch
      %52 = sbr.rel (0) target = $region33
    $region32: #{cnn_discriminator_forward.1} parent=1 // pred_region
      %53 = dma.done [#allocation8], 1280
    $region33: #{cnn_discriminator_forward.1} parent=1 // pred_fallthru
      _
    %vm55 = vcmask 253952
    %vm56 = vsmask.f32 256
    %vm57 = vmand %vm55, %vm56
    %v58 = vld [vmem:[#allocation2] sm:$0x1]
    %v59 = vsel %vm57, 0, %v58
    %60 = vst [vmem:[#allocation2] sm:$0x1] %v59
    %v61 = vld [vmem:[#allocation2 + $0xc] sm:$0x1]
    %v62 = vsel %vm57, 0, %v61
    %63 = vst [vmem:[#allocation2 + $0xc] sm:$0x1] %v62
    %vm64 = vcmask 257024
    %vm65 = vsmask.f32 7938
    %vm66 = vmand %vm64, %vm65
    %v67 = vld [vmem:[#allocation2 + $0x4] sm:$0xf]
    %v68 = vsel %vm66, 0, %v67
    %69 = vst [vmem:[#allocation2 + $0x4] sm:$0xf] %v68
    %vm70 = vcmask 254976
    %71 = vst.msk [vmem:[#allocation2 + $0x8] sm:$0x3] %vm70, 0
    %v72 = vld [vmem:[#allocation2 + $0x10] sm:$0xf]
    %v73 = vsel %vm66, 0, %v72
    %74 = vst [vmem:[#allocation2 + $0x10] sm:$0xf] %v73
    %75 = vst.msk [vmem:[#allocation2 + $0x14] sm:$0x3] %vm70, 0
    %v76 = vld [vmem:[#allocation4] sm:$0xff]
    %v77 = vld [vmem:[#allocation4 + $0x8] sm:$0xff]
    %v78 = vpack.c.bf16 %v76, %v76
    %v79 = vpack.c.bf16 %v77, %v77
    %v82 = vunpack.c.l.b16 %v78
    %v83 = vunpack.c.l.b16 %v79
    %v84 = vpack.c.b16 %v82, %v82
    %v85 = vpack.c.b16 %v83, %v83
    %v87 = vshrl.u32 %v84, 16
    %v89 = vrot.slane %v87, 7
    %v90 = vshll.u32 %v84, 16
    %v92 = vor.u32 %v89, %v90
    %v93 = vrot.slane %v89, 4
    %v95 = vshrl.u32 %v85, 16
    %v97 = vrot.slane %v95, 7
    %v98 = vshll.u32 %v85, 16
    %v100 = vor.u32 %v97, %v98
    %v101 = vrot.slane %v97, 4
    %v106 = vld [vmem:[#allocation2] sm:$0xf]
    %v107 = vsel %vm66, %v92, %v106
    %108 = vst [vmem:[#allocation2] sm:$0xf] %v107
    %v109 = vld [vmem:[#allocation2 + $0x4] sm:$0x1]
    %v110 = vsel %vm57, %v93, %v109
    %111 = vst [vmem:[#allocation2 + $0x4] sm:$0x1] %v110
    %v112 = vld [vmem:[#allocation2 + $0xc] sm:$0xf]
    %v113 = vsel %vm66, %v100, %v112
    %114 = vst [vmem:[#allocation2 + $0xc] sm:$0xf] %v113
    %v115 = vld [vmem:[#allocation2 + $0x10] sm:$0x1]
    %v116 = vsel %vm57, %v101, %v115
    %117 = vst [vmem:[#allocation2 + $0x10] sm:$0x1] %v116
    %v118 = vld [vmem:[#allocation2] sm:$0xf]
    %v119 = vld [vmem:[#allocation2 + $0x4] sm:$0xf]
    %v120 = vld [vmem:[#allocation2 + $0xc] sm:$0xf]
    %v121 = vld [vmem:[#allocation2 + $0x10] sm:$0xf]
    %v122 = vld [vmem:[#allocation7] sm:$0xf]
    %v123 = vld [vmem:[#allocation7 + $0x4] sm:$0xf]
    %v124 = vld [vmem:[#allocation7 + $0x8] sm:$0xf]
    %v125 = vld [vmem:[#allocation7 + $0xc] sm:$0xf]
    %v126 = vld [vmem:[#allocation2 + $0x8] sm:$0x1]
    %v127 = vld [vmem:[#allocation2 + $0x14] sm:$0x1]
    %vm128 = vsmask.f32 3328
    %vm129 = vsmask.f32 7440
    %vm130 = vmor %vm128, %vm129
    %v132 = vshrl.u32 %v118, 16
    %v134 = vrot.slane %v132, 4
    %v135 = vshll.u32 %v118, 16
    %v137 = vrot.slane %v135, 5
    %v138 = vor.u32 %v134, %v137
    %v139 = vrot.slane %v138, 4
    %v141 = vshll.u32 %v119, 16
    %v143 = vrot.slane %v141, 5
    %v144 = vsel %vm130, %v139, %v143
    %v145 = vshrl.u32 %v119, 16
    %v147 = vrot.slane %v145, 4
    %v148 = vor.u32 %v147, %v143
    %v149 = vrot.slane %v148, 4
    %v151 = vshll.u32 %v126, 16
    %v153 = vrot.slane %v151, 5
    %v154 = vsel %vm130, %v149, %v153
    %v156 = vshrl.u32 %v120, 16
    %v158 = vrot.slane %v156, 4
    %v159 = vshll.u32 %v120, 16
    %v161 = vrot.slane %v159, 5
    %v162 = vor.u32 %v158, %v161
    %v163 = vrot.slane %v162, 4
    %v165 = vshll.u32 %v121, 16
    %v167 = vrot.slane %v165, 5
    %v168 = vsel %vm130, %v163, %v167
    %v169 = vshrl.u32 %v121, 16
    %v171 = vrot.slane %v169, 4
    %v172 = vor.u32 %v171, %v167
    %v173 = vrot.slane %v172, 4
    %v175 = vshll.u32 %v127, 16
    %v177 = vrot.slane %v175, 5
    %v178 = vsel %vm130, %v173, %v177
    %s179 = scalar_lea.vmem [#allocation7], 16
    %v180 = vld [vmem:[%s179] sm:$0xf]
    %v181 = vld [vmem:[%s179 + $0x4] sm:$0xf]
    %v182 = vld [vmem:[%s179 + $0x8] sm:$0xf]
    %v183 = vld [vmem:[%s179 + $0xc] sm:$0xf]
    %v184 = vunpack.c.l.b16 %v144
    %v185 = vunpack.c.l.b16 %v154
    %v186 = vunpack.c.l.b16 %v168
    %v187 = vunpack.c.l.b16 %v178
    %v188 = vpack.c.b16 %v185, %v184
    %v189 = vpack.c.b16 %v187, %v186
    %v194 = vunpack.c.l.b16 %v180
    %v195 = vunpack.c.l.b16 %v181
    %v196 = vunpack.c.l.b16 %v182
    %v197 = vunpack.c.l.b16 %v183
    %v198 = vpack.c.b16 %v195, %v194
    %v199 = vpack.c.b16 %v197, %v196
    %vm202 = vcmask 261120
    %v204 = vsel %vm202, %v188, 0
    %v207 = vsel %vm202, %v189, 0
    %209 = vmatprep.subr.bf16.mxu0 0
    %210 = vmatpush1.bf16.msra.mxu0 %v198
    %211 = vmatprep.subr.bf16.mxu0 0
    %212 = vmatpush1.bf16.msra.mxu0 %v199
    %213 = vmatprep.subr.bf16.mxu0 0
    %214 = vmatpush1.bf16.msra.mxu0 0
    %215 = vmatprep.subr.bf16.mxu0 0
    %216 = vmatpush1.bf16.msra.mxu0 0
    %217 = vmatprep.subr.bf16.mxu0 0
    %218 = vmatpush1.bf16.msra.mxu0 0
    %219 = vmatprep.subr.bf16.mxu0 0
    %220 = vmatpush1.bf16.msra.mxu0 0
    %221 = vmatprep.subr.bf16.mxu0 0
    %222 = vmatpush1.bf16.msra.mxu0 0
    %223 = vmatprep.subr.bf16.mxu0 0
    %224 = vmatpush1.bf16.msra.mxu0 0
    %225 = vmatprep.subr.bf16.mxu0 0
    %226 = vmatpush1.bf16.msra.mxu0 0
    %227 = vmatprep.subr.bf16.mxu0 0
    %228 = vmatpush1.bf16.msra.mxu0 0
    %229 = vmatprep.subr.bf16.mxu0 0
    %230 = vmatpush1.bf16.msra.mxu0 0
    %231 = vmatprep.subr.bf16.mxu0 0
    %232 = vmatpush1.bf16.msra.mxu0 0
    %233 = vmatprep.subr.bf16.mxu0 0
    %234 = vmatpush1.bf16.msra.mxu0 0
    %235 = vmatprep.subr.bf16.mxu0 0
    %236 = vmatpush1.bf16.msra.mxu0 0
    %237 = vmatprep.subr.bf16.mxu0 0
    %238 = vmatpush1.bf16.msra.mxu0 0
    %239 = vmatprep.subr.bf16.mxu0 0
    %240 = vmatpush1.bf16.msra.mxu0 0
    %241 = vmatprep.mubr.bf16.mxu0 0
    %242 = vmatmul.mubr.bf16.gmra.mrb[0].mxu0 %v204
    %v243 = vpop.f32.mrb[0].mxu0
    %v244 = vadd.f32 0.0, %v243
    %v245 = vpop.f32.mrb[0].mxu0
    %v246 = vpop.f32.mrb[0].mxu0
    %v247 = vadd.f32 0.0, %v246
    %v248 = vpop.f32.mrb[0].mxu0
    %249 = vmatprep.mubr.bf16.mxu0 0
    %250 = vmatmul.mubr.bf16.gmra.mrb[0].mxu0 %v207
    %v251 = vpop.f32.mrb[0].mxu0
    %v252 = vadd.f32 0.0, %v251
    %v253 = vpop.f32.mrb[0].mxu0
    %v254 = vpop.f32.mrb[0].mxu0
    %v255 = vadd.f32 0.0, %v254
    %v256 = vpop.f32.mrb[0].mxu0
    %257 = vdwg.mxu0
    %v262 = vunpack.c.l.b16 %v118
    %v263 = vunpack.c.l.b16 %v119
    %v264 = vunpack.c.l.b16 %v120
    %v265 = vunpack.c.l.b16 %v121
    %v266 = vpack.c.b16 %v263, %v262
    %v267 = vpack.c.b16 %v265, %v264
    %v272 = vunpack.c.l.b16 %v122
    %v273 = vunpack.c.l.b16 %v123
    %v274 = vunpack.c.l.b16 %v124
    %v275 = vunpack.c.l.b16 %v125
    %v276 = vpack.c.b16 %v273, %v272
    %v277 = vpack.c.b16 %v275, %v274
    %v281 = vsel %vm202, %v266, 0
    %v284 = vsel %vm202, %v267, 0
    %286 = vmatprep.subr.bf16.mxu0 0
    %287 = vmatpush1.bf16.msra.mxu0 %v276
    %288 = vmatprep.subr.bf16.mxu0 0
    %289 = vmatpush1.bf16.msra.mxu0 %v277
    %290 = vmatprep.subr.bf16.mxu0 0
    %291 = vmatpush1.bf16.msra.mxu0 0
    %292 = vmatprep.subr.bf16.mxu0 0
    %293 = vmatpush1.bf16.msra.mxu0 0
    %294 = vmatprep.subr.bf16.mxu0 0
    %295 = vmatpush1.bf16.msra.mxu0 0
    %296 = vmatprep.subr.bf16.mxu0 0
    %297 = vmatpush1.bf16.msra.mxu0 0
    %298 = vmatprep.subr.bf16.mxu0 0
    %299 = vmatpush1.bf16.msra.mxu0 0
    %300 = vmatprep.subr.bf16.mxu0 0
    %301 = vmatpush1.bf16.msra.mxu0 0
    %302 = vmatprep.subr.bf16.mxu0 0
    %303 = vmatpush1.bf16.msra.mxu0 0
    %304 = vmatprep.subr.bf16.mxu0 0
    %305 = vmatpush1.bf16.msra.mxu0 0
    %306 = vmatprep.subr.bf16.mxu0 0
    %307 = vmatpush1.bf16.msra.mxu0 0
    %308 = vmatprep.subr.bf16.mxu0 0
    %309 = vmatpush1.bf16.msra.mxu0 0
    %310 = vmatprep.subr.bf16.mxu0 0
    %311 = vmatpush1.bf16.msra.mxu0 0
    %312 = vmatprep.subr.bf16.mxu0 0
    %313 = vmatpush1.bf16.msra.mxu0 0
    %314 = vmatprep.subr.bf16.mxu0 0
    %315 = vmatpush1.bf16.msra.mxu0 0
    %316 = vmatprep.subr.bf16.mxu0 0
    %317 = vmatpush1.bf16.msra.mxu0 0
    %318 = vmatprep.mubr.bf16.mxu0 0
    %319 = vmatmul.mubr.bf16.gmra.mrb[0].mxu0 %v281
    %v320 = vpop.f32.mrb[0].mxu0
    %v321 = vadd.f32 %v244, %v320
    %v322 = vpop.f32.mrb[0].mxu0
    %v323 = vpop.f32.mrb[0].mxu0
    %v324 = vadd.f32 %v247, %v323
    %v325 = vpop.f32.mrb[0].mxu0
    %326 = vmatprep.mubr.bf16.mxu0 0
    %327 = vmatmul.mubr.bf16.gmra.mrb[0].mxu0 %v284
    %v328 = vpop.f32.mrb[0].mxu0
    %v329 = vadd.f32 %v252, %v328
    %v330 = vpop.f32.mrb[0].mxu0
    %v331 = vpop.f32.mrb[0].mxu0
    %v332 = vadd.f32 %v255, %v331
    %v333 = vpop.f32.mrb[0].mxu0
    %334 = vdwg.mxu0
    %v335 = vld [vmem:[#allocation2] sm:$0xe]
    %v336 = vld [vmem:[#allocation2 + $0xc] sm:$0xe]
    %vm341 = vcmask 1042432
    %vm342 = vcmask 1046532
    %vm343 = vmor %vm341, %vm342
    %v344 = vrot.slane %v335, 5
    %v345 = vrot.slane %v344, 4
    %v346 = vrot.slane %v119, 5
    %v347 = vsel %vm343, %v345, %v346
    %v348 = vrot.slane %v346, 4
    %v349 = vrot.slane %v126, 5
    %v350 = vsel %vm343, %v348, %v349
    %v351 = vrot.slane %v336, 5
    %v352 = vrot.slane %v351, 4
    %v353 = vrot.slane %v121, 5
    %v354 = vsel %vm343, %v352, %v353
    %v355 = vrot.slane %v353, 4
    %v356 = vrot.slane %v127, 5
    %v357 = vsel %vm343, %v355, %v356
    %s358 = scalar_lea.vmem [#allocation7], 32
    %v359 = vld [vmem:[%s358] sm:$0xf]
    %v360 = vld [vmem:[%s358 + $0x4] sm:$0xf]
    %v361 = vld [vmem:[%s358 + $0x8] sm:$0xf]
    %v362 = vld [vmem:[%s358 + $0xc] sm:$0xf]
    %v363 = vunpack.c.l.b16 %v347
    %v364 = vunpack.c.l.b16 %v350
    %v365 = vunpack.c.l.b16 %v354
    %v366 = vunpack.c.l.b16 %v357
    %v367 = vpack.c.b16 %v364, %v363
    %v368 = vpack.c.b16 %v366, %v365
    %v373 = vunpack.c.l.b16 %v359
    %v374 = vunpack.c.l.b16 %v360
    %v375 = vunpack.c.l.b16 %v361
    %v376 = vunpack.c.l.b16 %v362
    %v377 = vpack.c.b16 %v374, %v373
    %v378 = vpack.c.b16 %v376, %v375
    %v382 = vsel %vm202, %v367, 0
    %v385 = vsel %vm202, %v368, 0
    %387 = vmatprep.subr.bf16.mxu0 0
    %388 = vmatpush1.bf16.msra.mxu0 %v377
    %389 = vmatprep.subr.bf16.mxu0 0
    %390 = vmatpush1.bf16.msra.mxu0 %v378
    %391 = vmatprep.subr.bf16.mxu0 0
    %392 = vmatpush1.bf16.msra.mxu0 0
    %393 = vmatprep.subr.bf16.mxu0 0
    %394 = vmatpush1.bf16.msra.mxu0 0
    %395 = vmatprep.subr.bf16.mxu0 0
    %396 = vmatpush1.bf16.msra.mxu0 0
    %397 = vmatprep.subr.bf16.mxu0 0
    %398 = vmatpush1.bf16.msra.mxu0 0
    %399 = vmatprep.subr.bf16.mxu0 0
    %400 = vmatpush1.bf16.msra.mxu0 0
    %401 = vmatprep.subr.bf16.mxu0 0
    %402 = vmatpush1.bf16.msra.mxu0 0
    %403 = vmatprep.subr.bf16.mxu0 0
    %404 = vmatpush1.bf16.msra.mxu0 0
    %405 = vmatprep.subr.bf16.mxu0 0
    %406 = vmatpush1.bf16.msra.mxu0 0
    %407 = vmatprep.subr.bf16.mxu0 0
    %408 = vmatpush1.bf16.msra.mxu0 0
    %409 = vmatprep.subr.bf16.mxu0 0
    %410 = vmatpush1.bf16.msra.mxu0 0
    %411 = vmatprep.subr.bf16.mxu0 0
    %412 = vmatpush1.bf16.msra.mxu0 0
    %413 = vmatprep.subr.bf16.mxu0 0
    %414 = vmatpush1.bf16.msra.mxu0 0
    %415 = vmatprep.subr.bf16.mxu0 0
    %416 = vmatpush1.bf16.msra.mxu0 0
    %417 = vmatprep.subr.bf16.mxu0 0
    %418 = vmatpush1.bf16.msra.mxu0 0
    %419 = vmatprep.mubr.bf16.mxu0 0
    %420 = vmatmul.mubr.bf16.gmra.mrb[0].mxu0 %v382
    %v421 = vpop.f32.mrb[0].mxu0
    %v422 = vadd.f32 0.0, %v421
    %v423 = vpop.f32.mrb[0].mxu0
    %v424 = vpop.f32.mrb[0].mxu0
    %v425 = vadd.f32 0.0, %v424
    %v426 = vpop.f32.mrb[0].mxu0
    %427 = vmatprep.mubr.bf16.mxu0 0
    %428 = vmatmul.mubr.bf16.gmra.mrb[0].mxu0 %v385
    %v429 = vpop.f32.mrb[0].mxu0
    %v430 = vadd.f32 0.0, %v429
    %v431 = vpop.f32.mrb[0].mxu0
    %v432 = vpop.f32.mrb[0].mxu0
    %v433 = vadd.f32 0.0, %v432
    %v434 = vpop.f32.mrb[0].mxu0
    %435 = vdwg.mxu0
    %v436 = vadd.f32 %v321, %v422
    %v437 = vadd.f32 %v324, %v425
    %v438 = vadd.f32 %v329, %v430
    %v439 = vadd.f32 %v332, %v433
    %v440 = vld [vmem:[#allocation2 + $0x8] sm:$0x3]
    %v441 = vld [vmem:[#allocation2 + $0x14] sm:$0x3]
    %vm442 = vsmask.f32 2304
    %vm443 = vsmask.f32 6416
    %vm444 = vmor %vm442, %vm443
    %v446 = vshrl.u32 %v335, 16
    %v448 = vrot.slane %v446, 5
    %v449 = vshll.u32 %v335, 16
    %v451 = vrot.slane %v449, 6
    %v452 = vor.u32 %v448, %v451
    %v453 = vrot.slane %v452, 4
    %v454 = vrot.slane %v145, 5
    %v455 = vrot.slane %v141, 6
    %v456 = vor.u32 %v454, %v455
    %v457 = vsel %vm444, %v453, %v456
    %v458 = vrot.slane %v456, 4
    %v460 = vshrl.u32 %v440, 16
    %v462 = vrot.slane %v460, 5
    %v463 = vshll.u32 %v440, 16
    %v465 = vrot.slane %v463, 6
    %v466 = vor.u32 %v462, %v465
    %v467 = vsel %vm444, %v458, %v466
    %v469 = vshrl.u32 %v336, 16
    %v471 = vrot.slane %v469, 5
    %v472 = vshll.u32 %v336, 16
    %v474 = vrot.slane %v472, 6
    %v475 = vor.u32 %v471, %v474
    %v476 = vrot.slane %v475, 4
    %v477 = vrot.slane %v169, 5
    %v478 = vrot.slane %v165, 6
    %v479 = vor.u32 %v477, %v478
    %v480 = vsel %vm444, %v476, %v479
    %v481 = vrot.slane %v479, 4
    %v483 = vshrl.u32 %v441, 16
    %v485 = vrot.slane %v483, 5
    %v486 = vshll.u32 %v441, 16
    %v488 = vrot.slane %v486, 6
    %v489 = vor.u32 %v485, %v488
    %v490 = vsel %vm444, %v481, %v489
    %s491 = scalar_lea.vmem [#allocation7], 48
    %v492 = vld [vmem:[%s491] sm:$0xf]
    %v493 = vld [vmem:[%s491 + $0x4] sm:$0xf]
    %v494 = vld [vmem:[%s491 + $0x8] sm:$0xf]
    %v495 = vld [vmem:[%s491 + $0xc] sm:$0xf]
    %v496 = vunpack.c.l.b16 %v457
    %v497 = vunpack.c.l.b16 %v467
    %v498 = vunpack.c.l.b16 %v480
    %v499 = vunpack.c.l.b16 %v490
    %v500 = vpack.c.b16 %v497, %v496
    %v501 = vpack.c.b16 %v499, %v498
    %v506 = vunpack.c.l.b16 %v492
    %v507 = vunpack.c.l.b16 %v493
    %v508 = vunpack.c.l.b16 %v494
    %v509 = vunpack.c.l.b16 %v495
    %v510 = vpack.c.b16 %v507, %v506
    %v511 = vpack.c.b16 %v509, %v508
    %v515 = vsel %vm202, %v500, 0
    %v518 = vsel %vm202, %v501, 0
    %520 = vmatprep.subr.bf16.mxu0 0
    %521 = vmatpush1.bf16.msra.mxu0 %v510
    %522 = vmatprep.subr.bf16.mxu0 0
    %523 = vmatpush1.bf16.msra.mxu0 %v511
    %524 = vmatprep.subr.bf16.mxu0 0
    %525 = vmatpush1.bf16.msra.mxu0 0
    %526 = vmatprep.subr.bf16.mxu0 0
    %527 = vmatpush1.bf16.msra.mxu0 0
    %528 = vmatprep.subr.bf16.mxu0 0
    %529 = vmatpush1.bf16.msra.mxu0 0
    %530 = vmatprep.subr.bf16.mxu0 0
    %531 = vmatpush1.bf16.msra.mxu0 0
    %532 = vmatprep.subr.bf16.mxu0 0
    %533 = vmatpush1.bf16.msra.mxu0 0
    %534 = vmatprep.subr.bf16.mxu0 0
    %535 = vmatpush1.bf16.msra.mxu0 0
    %536 = vmatprep.subr.bf16.mxu0 0
    %537 = vmatpush1.bf16.msra.mxu0 0
    %538 = vmatprep.subr.bf16.mxu0 0
    %539 = vmatpush1.bf16.msra.mxu0 0
    %540 = vmatprep.subr.bf16.mxu0 0
    %541 = vmatpush1.bf16.msra.mxu0 0
    %542 = vmatprep.subr.bf16.mxu0 0
    %543 = vmatpush1.bf16.msra.mxu0 0
    %544 = vmatprep.subr.bf16.mxu0 0
    %545 = vmatpush1.bf16.msra.mxu0 0
    %546 = vmatprep.subr.bf16.mxu0 0
    %547 = vmatpush1.bf16.msra.mxu0 0
    %548 = vmatprep.subr.bf16.mxu0 0
    %549 = vmatpush1.bf16.msra.mxu0 0
    %550 = vmatprep.subr.bf16.mxu0 0
    %551 = vmatpush1.bf16.msra.mxu0 0
    %552 = vmatprep.mubr.bf16.mxu0 0
    %553 = vmatmul.mubr.bf16.gmra.mrb[0].mxu0 %v515
    %v554 = vpop.f32.mrb[0].mxu0
    %v555 = vadd.f32 0.0, %v554
    %v556 = vpop.f32.mrb[0].mxu0
    %v557 = vpop.f32.mrb[0].mxu0
    %v558 = vadd.f32 0.0, %v557
    %v559 = vpop.f32.mrb[0].mxu0
    %560 = vmatprep.mubr.bf16.mxu0 0
    %561 = vmatmul.mubr.bf16.gmra.mrb[0].mxu0 %v518
    %v562 = vpop.f32.mrb[0].mxu0
    %v563 = vadd.f32 0.0, %v562
    %v564 = vpop.f32.mrb[0].mxu0
    %v565 = vpop.f32.mrb[0].mxu0
    %v566 = vadd.f32 0.0, %v565
    %v567 = vpop.f32.mrb[0].mxu0
    %568 = vdwg.mxu0
    %v569 = vadd.f32 %v436, %v555
    %v570 = vadd.f32 %v437, %v558
    %v571 = vadd.f32 %v438, %v563
    %v572 = vadd.f32 %v439, %v566
    %v573 = vld [vmem:[#allocation2] sm:$0xc]
    %v574 = vld [vmem:[#allocation2 + $0xc] sm:$0xc]
    %vm579 = vcmask 1041408
    %vm580 = vcmask 1045508
    %vm581 = vmor %vm579, %vm580
    %v582 = vrot.slane %v573, 6
    %v583 = vrot.slane %v582, 4
    %v584 = vrot.slane %v119, 6
    %v585 = vsel %vm581, %v583, %v584
    %v586 = vrot.slane %v584, 4
    %v587 = vrot.slane %v440, 6
    %v588 = vsel %vm581, %v586, %v587
    %v589 = vrot.slane %v574, 6
    %v590 = vrot.slane %v589, 4
    %v591 = vrot.slane %v121, 6
    %v592 = vsel %vm581, %v590, %v591
    %v593 = vrot.slane %v591, 4
    %v594 = vrot.slane %v441, 6
    %v595 = vsel %vm581, %v593, %v594
    %s596 = scalar_lea.vmem [#allocation7], 64
    %v597 = vld [vmem:[%s596] sm:$0xf]
    %v598 = vld [vmem:[%s596 + $0x4] sm:$0xf]
    %v599 = vld [vmem:[%s596 + $0x8] sm:$0xf]
    %v600 = vld [vmem:[%s596 + $0xc] sm:$0xf]
    %v601 = vunpack.c.l.b16 %v585
    %v602 = vunpack.c.l.b16 %v588
    %v603 = vunpack.c.l.b16 %v592
    %v604 = vunpack.c.l.b16 %v595
    %v605 = vpack.c.b16 %v602, %v601
    %v606 = vpack.c.b16 %v604, %v603
    %v611 = vunpack.c.l.b16 %v597
    %v612 = vunpack.c.l.b16 %v598
    %v613 = vunpack.c.l.b16 %v599
    %v614 = vunpack.c.l.b16 %v600
    %v615 = vpack.c.b16 %v612, %v611
    %v616 = vpack.c.b16 %v614, %v613
    %v620 = vsel %vm202, %v605, 0
    %v623 = vsel %vm202, %v606, 0
    %625 = vmatprep.subr.bf16.mxu0 0
    %626 = vmatpush1.bf16.msra.mxu0 %v615
    %627 = vmatprep.subr.bf16.mxu0 0
    %628 = vmatpush1.bf16.msra.mxu0 %v616
    %629 = vmatprep.subr.bf16.mxu0 0
    %630 = vmatpush1.bf16.msra.mxu0 0
    %631 = vmatprep.subr.bf16.mxu0 0
    %632 = vmatpush1.bf16.msra.mxu0 0
    %633 = vmatprep.subr.bf16.mxu0 0
    %634 = vmatpush1.bf16.msra.mxu0 0
    %635 = vmatprep.subr.bf16.mxu0 0
    %636 = vmatpush1.bf16.msra.mxu0 0
    %637 = vmatprep.subr.bf16.mxu0 0
    %638 = vmatpush1.bf16.msra.mxu0 0
    %639 = vmatprep.subr.bf16.mxu0 0
    %640 = vmatpush1.bf16.msra.mxu0 0
    %641 = vmatprep.subr.bf16.mxu0 0
    %642 = vmatpush1.bf16.msra.mxu0 0
    %643 = vmatprep.subr.bf16.mxu0 0
    %644 = vmatpush1.bf16.msra.mxu0 0
    %645 = vmatprep.subr.bf16.mxu0 0
    %646 = vmatpush1.bf16.msra.mxu0 0
    %647 = vmatprep.subr.bf16.mxu0 0
    %648 = vmatpush1.bf16.msra.mxu0 0
    %649 = vmatprep.subr.bf16.mxu0 0
    %650 = vmatpush1.bf16.msra.mxu0 0
    %651 = vmatprep.subr.bf16.mxu0 0
    %652 = vmatpush1.bf16.msra.mxu0 0
    %653 = vmatprep.subr.bf16.mxu0 0
    %654 = vmatpush1.bf16.msra.mxu0 0
    %655 = vmatprep.subr.bf16.mxu0 0
    %656 = vmatpush1.bf16.msra.mxu0 0
    %657 = vmatprep.mubr.bf16.mxu0 0
    %658 = vmatmul.mubr.bf16.gmra.mrb[0].mxu0 %v620
    %v659 = vpop.f32.mrb[0].mxu0
    %v660 = vadd.f32 0.0, %v659
    %v661 = vpop.f32.mrb[0].mxu0
    %v662 = vpop.f32.mrb[0].mxu0
    %v663 = vadd.f32 0.0, %v662
    %v664 = vpop.f32.mrb[0].mxu0
    %665 = vmatprep.mubr.bf16.mxu0 0
    %666 = vmatmul.mubr.bf16.gmra.mrb[0].mxu0 %v623
    %v667 = vpop.f32.mrb[0].mxu0
    %v668 = vadd.f32 0.0, %v667
    %v669 = vpop.f32.mrb[0].mxu0
    %v670 = vpop.f32.mrb[0].mxu0
    %v671 = vadd.f32 0.0, %v670
    %v672 = vpop.f32.mrb[0].mxu0
    %673 = vdwg.mxu0
    %v674 = vadd.f32 %v569, %v660
    %v675 = vadd.f32 %v570, %v663
    %v676 = vadd.f32 %v571, %v668
    %v677 = vadd.f32 %v572, %v671
    %v678 = vld [vmem:[%s2] sm:$0x1]
    %v680 = vlaneseq
    %v681 = vshrl.u32 %v680, 7
    %v682 = vsub.s32 0, %v681
    %v683 = vrot.slane %v678, %v682
    %v685 = vadd.f32 %v674, %v683
    %v686 = vadd.f32 %v675, %v683
    %v687 = vadd.f32 %v676, %v683
    %v688 = vadd.f32 %v677, %v683
    %vm689 = vcmp.ge.f32.partialorder %v685, 0.0
    %vm690 = vcmp.ge.f32.partialorder %v686, 0.0
    %vm691 = vcmp.ge.f32.partialorder %v687, 0.0
    %vm692 = vcmp.ge.f32.partialorder %v688, 0.0
    %v693 = vmul.f32 %v685, 0.2
    %v694 = vmul.f32 %v686, 0.2
    %v695 = vmul.f32 %v687, 0.2
    %v696 = vmul.f32 %v688, 0.2
    %v697 = vsel %vm689, %v685, %v693
    %v698 = vsel %vm690, %v686, %v694
    %v699 = vsel %vm691, %v687, %v695
    %v700 = vsel %vm692, %v688, %v696
    %v701 = vld [vmem:[%s3] sm:$0x1]
    %v702 = vsub.s32 11, %v701
    %vm703 = vcmp.gt.s32.totalorder %v702, 1
    %v704 = vsel %vm703, %v702, 1
    %v705 = vlaneseq
    %v706 = vshrl.u32 %v705, 7
    %v707 = vadd.s32 %v706, 8
    %v708 = vlaneseq
    %v709 = vshrl.u32 %v708, 7
    %v710 = vsub.s32 0, %v709
    %v711 = vrot.slane %v704, %v710
    %vm712 = vcmp.lt.s32.totalorder %v706, %v711
    %vm713 = vcmp.lt.s32.totalorder %v707, %v711
    %v714 = vsel %vm712, 1, 0
    %v715 = vsel %vm713, 1, 0
    %vm716 = vcmp.eq.s32.totalorder %v714, 1
    %vm717 = vcmp.eq.s32.totalorder %v715, 1
    %v718 = vsel %vm716, %v697, -1e+30
    %v719 = vsel %vm717, %v698, -1e+30
    %v720 = vsel %vm716, %v699, -1e+30
    %v721 = vsel %vm717, %v700, -1e+30
    %v722 = vmax.f32 %v718, %v719
    %v723 = vrot.slane %v722, 4
    %v724 = vmax.f32 %v722, %v723
    %v725 = vrot.slane %v724, 2
    %v726 = vmax.f32 %v724, %v725
    %v727 = vrot.slane %v726, 1
    %v728 = vmax.f32 %v726, %v727
    %v729 = vmax.f32 %v720, %v721
    %v730 = vrot.slane %v729, 4
    %v731 = vmax.f32 %v729, %v730
    %v732 = vrot.slane %v731, 2
    %v733 = vmax.f32 %v731, %v732
    %v734 = vrot.slane %v733, 1
    %v735 = vmax.f32 %v733, %v734
    %v736 = vld [vmem:[%s4] sm:$0x1]
    %v738 = vlaneseq
    %v739 = vshrl.u32 %v738, 7
    %v740 = vsub.s32 0, %v739
    %v741 = vrot.slane %v736, %v740
    %v743 = vmul.f32 %v728, %v741
    %v744 = vmul.f32 %v735, %v741
    %v747 = vrot.slane %v744, 7
    %vm748 = vcmask 1041409
    %v749 = vsel %vm748, %v747, %v743
    %vm751 = vcmask 1041408
    %v752 = vsel %vm751, %v749, 0.0
    %753 = vadd.xlane.f32.xlu0 %v752
    %v754 = vpop.xlane.xlu0 %753
    %v755 = vld [vmem:[#allocation3] sm:$0x1]
    %757 = vset.pattern.permute.xlu0 0
    %758 = vperm.xlu0 %757, %v755
    %v759 = vpop.permute.xlu0 %758
    %v761 = vlaneseq
    %v762 = vshrl.u32 %v761, 7
    %v763 = vsub.s32 0, %v762
    %v764 = vrot.slane %v759, %v763
    %v765 = vadd.f32 %v754, %v764
    %v767 = vlaneseq
    %v768 = vand.u32 %v767, 127
    %v769 = vlaneseq
    %v770 = vshrl.u32 %v769, 7
    %v771 = vsub.s32 %v768, %v770
    %v772 = vrot.slane %v765, %v771
    %vm774 = vcmask 8192
    %775 = vst.msk [vmem:[#allocation9] sm:$0x1] %vm774, %v772
    // Predicated region
    $region34: #{cnn_discriminator_forward.1} parent=1 // pred_check
      _
    $region35: #{cnn_discriminator_forward.1} parent=1 // pred_check_branch
      %777 = sbr.rel (0) target = $region37
    $region36: #{cnn_discriminator_forward.1} parent=1 // pred_region
      %s779 = ssub.s32 16, 16
      %780 = vsyncadd [#allocation6], %s779
      %s782 = sshll.u32 [#allocation9], 4
      %s783 = int_to_ptr.vmem [resolvable:$true] %s782
      %785 = dma.vmem_to_hbm [thread:$0]  %s783, 16, %s6, [#allocation6]
    $region37: #{cnn_discriminator_forward.1} parent=1 // pred_fallthru
      _
    // Predicated region
    $region38: #{cnn_discriminator_forward.1} parent=1 // pred_check
      _
    $region39: #{cnn_discriminator_forward.1} parent=1 // pred_check_branch
      %787 = sbr.rel (0) target = $region41
    $region40: #{cnn_discriminator_forward.1} parent=1 // pred_region
      %788 = dma.done [#allocation6], 16
    $region41: #{cnn_discriminator_forward.1} parent=1 // pred_fallthru
      _
    %789 = vsyncpa [#allocation5], 1
    %790 = vsyncpa [#allocation8], 1
    %791 = vsyncpa [#allocation6], 1

</llo_original>
